<compile_context>
chip_gen: v7x
topology: tpu7x:2x2x1
jax: 0.10.0
libtpu: 0.0.40
codegen_flags: <defaults>
</compile_context>

<pallas_src>
import functools

import jax
import jax.numpy as jnp
from jax import lax
from jax.experimental import pallas as pl
from jax.experimental.pallas import tpu as pltpu

# Off-diagonal entries of (cos+1) are >= 0 and the diagonal is masked to 0,
# so any negative sentinel can never win the global max.
_SENTINEL = -1.0


def _inv_norm_kernel(w_ref, inv_ref):
    """Per-row inverse L2 norm of one (tile_n, D) block."""
    w = w_ref[...].astype(jnp.float32)
    sq = jnp.sum(w * w, axis=1, keepdims=True)      # (tile_n, 1)
    inv_ref[...] = lax.rsqrt(sq)                    # one EUP op, no divide
    # TODO(synk): rows with exactly zero norm produce inf/NaN, matching the
    # PyTorch reference; use rsqrt(max(sq, eps)) only if such inputs can occur.


def _sim_tri_kernel(i_of_ref, j_of_ref,                   # scalar prefetch (SMEM)
                    wi_ref, wj_ref, inv_i_ref, inv_j_ref,  # VMEM input blocks
                    out_ref,                               # (1, 1) output
                    acc_ref, max_ref, *,                   # VMEM scratch
                    tile_n, gi, n_valid, need_pad_mask):
    t = pl.program_id(0)          # triangular block-pair index
    k = pl.program_id(1)          # feature (K) block index
    nt = pl.num_programs(0)
    gk = pl.num_programs(1)
    i = i_of_ref[t]
    j = j_of_ref[t]

    @pl.when((t == 0) & (k == 0))
    def _init_global():
        # Diagonal is masked to 0 and off-diagonal cos+1 >= 0, so 0 is the
        # true floor of the reference result (exact for N == 1 as well).
        max_ref[...] = jnp.zeros_like(max_ref)

    @pl.when(k == 0)
    def _init_block():
        acc_ref[...] = jnp.zeros_like(acc_ref)

    # Raw Gram block on the MXU: contract the feature axis of both operands
    # directly (A @ B^T, no materialized transpose of the weight block).
    acc_ref[...] += lax.dot_general(
        wi_ref[...], wj_ref[...],
        dimension_numbers=(((1,), (1,)), ((), ())),
        preferred_element_type=jnp.float32)

    @pl.when(k == gk - 1)
    def _finalize_block():
        # Cosine similarity + 1, scaled post-matmul by the precomputed
        # inverse norms (outer-product scaling).
        sim = acc_ref[...] * inv_i_ref[...]     # (tile_n, 1) row scale
        sim = sim * inv_j_ref[...]              # (1, tile_n) col scale
        sim = sim + 1.0

        is_diag = i == j
        if need_pad_mask:   # static: only when N was padded to a tile multiple
            needs_mask = is_diag | (i == gi - 1) | (j == gi - 1)
        else:
            needs_mask = is_diag

        @pl.when(needs_mask)
        def _masked():
            # Local iota: on a diagonal block the i*tile_n / j*tile_n offsets
            # cancel, so global ids are only needed for the padding mask.
            r = lax.broadcasted_iota(jnp.int32, (tile_n, tile_n), 0)
            c = lax.broadcasted_iota(jnp.int32, (tile_n, tile_n), 1)
            m = jnp.where(is_diag & (r == c), 0.0, sim)
            if need_pad_mask:
                valid = ((i * tile_n + r) < n_valid) & ((j * tile_n + c) < n_valid)
                # Also flushes the 0*inf NaNs produced by padded (zero) rows.
                m = jnp.where(valid, m, _SENTINEL)
            max_ref[...] = jnp.maximum(max_ref[...], jnp.max(m, keepdims=True))

        @pl.when(jnp.logical_not(needs_mask))
        def _plain():
            # Off-diagonal interior blocks: no iota, no compare, no select.
            max_ref[...] = jnp.maximum(max_ref[...], jnp.max(sim, keepdims=True))

        @pl.when(t == nt - 1)
        def _store():
            out_ref[...] = max_ref[...]        # single scalar write, once


def _device_defaults():
    """(tile, vmem_capacity_bytes) tuned per TPU generation, safe fallbacks."""
    tile = 256                      # matches v6e/v7x 2x256^2 MXU
    try:
        kind = jax.devices()[0].device_kind.lower()
        if "v5 lite" in kind or "v5e" in kind or "v5litepod" in kind:
            tile = 128              # v5e MXU is 4x128^2
    except Exception:
        pass
    try:
        cap = int(pltpu.get_tpu_info().vmem_capacity_bytes)
    except Exception:
        cap = 64 * 1024 * 1024      # conservative (v7x per-TensorCore)
    return tile, cap


def prototype_set_forward(weights: jax.Array, *, tile: int | None = None,
                          tile_d_max: int = 512) -> jax.Array:
    """weights: (N, D). Returns scalar f32 = max of (w_n @ w_n.T + 1 - 2*eye)."""
    n, d = weights.shape
    default_tile, vmem_cap = _device_defaults()
    if tile is None:
        tile = default_tile

    if n <= tile:
        tile_n, n_pad = n, n        # single block: full-extent BlockSpecs
    else:
        assert tile % 128 == 0, "tile must be a multiple of 128 when N > tile"
        tile_n = tile
        n_pad = ((n + tile_n - 1) // tile_n) * tile_n
    gi = n_pad // tile_n

    # K (feature) tiling bounds operand VMEM independently of D.
    if d <= tile_d_max:
        tile_d, d_pad = d, d
    else:
        tile_d = tile_d_max
        d_pad = ((d + tile_d - 1) // tile_d) * tile_d
    gk = d_pad // tile_d

    w = weights
    if (n_pad != n) or (d_pad != d):
        # Zero padding changes neither the norms nor the Gram matrix entries.
        w = jnp.pad(w, ((0, n_pad - n), (0, d_pad - d)))

    # ---- Pass 1: per-row inverse norms (tiny, O(N*D)) ------------------------
    inv_col = pl.pallas_call(
        _inv_norm_kernel,
        out_shape=jax.ShapeDtypeStruct((n_pad, 1), jnp.float32),
        grid=(gi,),
        in_specs=[pl.BlockSpec((tile_n, d_pad), lambda i: (i, 0))],
        out_specs=pl.BlockSpec((tile_n, 1), lambda i: (i, 0)),
        compiler_params=pltpu.CompilerParams(
            dimension_semantics=("parallel",)),
    )(w)
    # Lane-oriented copy for the column scaling (tiny wrapper-side plumbing).
    inv_row = inv_col.reshape(1, n_pad)

    # ---- Pass 2: triangular blocked Gram + gated masks + running max ---------
    ii, jj = jnp.triu_indices(gi)              # i_of[t] <= j_of[t]
    i_of = ii.astype(jnp.int32)
    j_of = jj.astype(jnp.int32)
    n_tri = gi * (gi + 1) // 2

    itemsize = jnp.dtype(w.dtype).itemsize
    vmem_est = (2 * 2 * tile_n * tile_d * itemsize    # wi + wj, double buffered
                + 6 * tile_n * tile_n * 4             # acc scratch + sim temporaries
                + 8 * tile_n * 4                      # inverse-norm blocks
                + (4 << 20))                          # Mosaic internal headroom
    vmem_limit = int(min(max(vmem_est, 32 << 20), 0.85 * vmem_cap))

    kernel = functools.partial(
        _sim_tri_kernel,
        tile_n=tile_n, gi=gi, n_valid=n, need_pad_mask=(n_pad != n))

    result = pl.pallas_call(
        kernel,
        out_shape=jax.ShapeDtypeStruct((1, 1), jnp.float32),
        grid_spec=pltpu.PrefetchScalarGridSpec(
            num_scalar_prefetch=2,
            grid=(n_tri, gk),
            in_specs=[
                pl.BlockSpec((tile_n, tile_d),
                             lambda t, k, i_of, j_of: (i_of[t], k)),   # row block
                pl.BlockSpec((tile_n, tile_d),
                             lambda t, k, i_of, j_of: (j_of[t], k)),   # col block
                pl.BlockSpec((tile_n, 1),
                             lambda t, k, i_of, j_of: (i_of[t], 0)),   # inv norms (rows)
                pl.BlockSpec((1, tile_n),
                             lambda t, k, i_of, j_of: (0, j_of[t])),   # inv norms (cols)
            ],
            out_specs=pl.BlockSpec((1, 1), lambda t, k, i_of, j_of: (0, 0)),
            scratch_shapes=[pltpu.VMEM((tile_n, tile_n), jnp.float32),  # Gram acc
                            pltpu.VMEM((1, 1), jnp.float32)]),          # running max
        compiler_params=pltpu.CompilerParams(
            dimension_semantics=("arbitrary", "arbitrary"),
            vmem_limit_bytes=vmem_limit),
    )(i_of, j_of, w, w, inv_col, inv_row)

    return result[0, 0]


def reference_forward(weights: jax.Array) -> jax.Array:
    w = weights / jnp.linalg.norm(weights, axis=1, keepdims=True)
    sim = jnp.matmul(w, w.T, precision=lax.Precision.HIGHEST) + 1.0
    sim = sim - 2.0 * jnp.eye(sim.shape[0], dtype=sim.dtype)
    return jnp.max(jnp.max(sim, axis=1))


if __name__ == "__main__":
    key = jax.random.PRNGKey(0)
    k0, k1 = jax.random.split(key)

    # PrototypeSet(number=8, dimensions=32): single-block path.
    number, dimensions = 8, 32
    protos = jax.random.normal(k0, (number, dimensions), dtype=jnp.float32)
    out = jax.block_until_ready(prototype_set_forward(protos))
    ref = reference_forward(protos)
    assert jnp.allclose(out, ref, atol=1e-5, rtol=1e-5), (out, ref)

    # Larger config: exercises the triangular grid, padding mask and gating.
    big = jax.random.normal(k1, (300, 64), dtype=jnp.float32)
    out_big = jax.block_until_ready(prototype_set_forward(big, tile=128))
    ref_big = reference_forward(big)
    assert jnp.allclose(out_big, ref_big, atol=1e-4, rtol=1e-4), (out_big, ref_big)

    print("KERNEL_OK")
</pallas_src>

<mosaic_0001>
module attributes {stable_mosaic.version = 11 : i64} {
  func.func @_inv_norm_kernel(%arg0: i32, %arg1: memref<8x32xf32, #tpu.memory_space<vmem>>, %arg2: memref<8x1xf32, #tpu.memory_space<vmem>>) attributes {dimension_semantics = [#tpu.dimension_semantics<parallel>], iteration_bounds = array<i64: 1>, scalar_prefetch = 0 : i64, scratch_operands = 0 : i64, tpu.core_type = #tpu.core_type<tc>, window_params = [{transform_indices = @transform_0, window_bounds = array<i64: 8, 32>}, {transform_indices = @transform_1, window_bounds = array<i64: 8, 1>}]} {
    %c0 = arith.constant 0 : index
    %c0_0 = arith.constant 0 : index
    %0 = vector.load %arg1[%c0, %c0_0] : memref<8x32xf32, #tpu.memory_space<vmem>>, vector<8x32xf32>
    %1 = arith.mulf %0, %0 : vector<8x32xf32>
    %cst = arith.constant dense<0.000000e+00> : vector<8xf32>
    %2 = vector.multi_reduction <add>, %1, %cst [1] : vector<8x32xf32> to vector<8xf32>
    %3 = vector.shape_cast %2 : vector<8xf32> to vector<8x1xf32>
    %4 = math.rsqrt %3 : vector<8x1xf32>
    %c0_1 = arith.constant 0 : index
    %c0_2 = arith.constant 0 : index
    %5 = vector.load %arg2[%c0_1, %c0_2] : memref<8x1xf32, #tpu.memory_space<vmem>>, vector<8x1xf32>
    tpu.vector_store %arg2[%c0_1, %c0_2], %4 {strides = array<i32>} : memref<8x1xf32, #tpu.memory_space<vmem>>, vector<8x1xf32>,
    return
  }
  func.func @transform_0(%arg0: i32) -> (i32, i32) {
    %c0_i32 = arith.constant 0 : i32
    %c0_i32_0 = arith.constant 0 : i32
    return %arg0, %c0_i32 : i32, i32
  }
  func.func @transform_1(%arg0: i32) -> (i32, i32) {
    %c0_i32 = arith.constant 0 : i32
    %c0_i32_0 = arith.constant 0 : i32
    return %arg0, %c0_i32 : i32, i32
  }
}

</mosaic_0001>

<llo_original>
// kernel: tpu_custom_call.1
$region0: #{tpu_custom_call.1}
  #allocation0 [shape = 'u32[]', space=smem, size = 0x4, offset = 0x4, fixed_abs, tag = 'smem constant byte address 0x4 - core index']
  #allocation1 [shape = 'u32[144,128]{1,0:T(1,128)}', space=vmem, size = 0x12000, scoped, tag = 'internal scratch']
  %s0 = inlined_call_operand.hbm [shape: f32[8,32], index: 0, kind: input, shape index: {}]
  %s1 = inlined_call_operand.vmem [shape: f32[8,1], index: 1, kind: output, shape index: {}]
  %s2 = sld [smem:[#allocation0]]
  $region18: #{tpu_custom_call.1} parent=0
    _
  %s4 = ssub.s32 1, %s2
  %s5 = scalar_select 0, %s4, %s2
  $region1: #{tpu_custom_call.1} parent=0
    #allocation2 [shape = 'u8[4096]{0}', space=vmem, size = 0x1000, scoped, tag = 'input window, operand 0, single buffered']
    #allocation3 [shape = 's32[1]{0}', space=sflag, size = 0x4, scoped, tag = 'scoped memory for tpu_custom_call.1']
    %6 = vsyncpa [#allocation3], 0
    // Predicated region
    $region2: #{tpu_custom_call.1} parent=1 // pred_check
      _
    $region3: #{tpu_custom_call.1} parent=1 // pred_check_branch
      %8 = sbr.rel (0) target = $region5
    $region4: #{tpu_custom_call.1} parent=1 // pred_region
      %s10 = ssub.s32 128, 128
      %11 = vsyncadd [#allocation3], %s10
      %s13 = sshll.u32 [#allocation2], 4
      %s14 = int_to_ptr.vmem [resolvable:$true] %s13
      %16 = dma.hbm_to_vmem [thread:$0]  %s0, 128, %s14, [#allocation3]
    $region5: #{tpu_custom_call.1} parent=1 // pred_fallthru
      _
    // Predicated region
    $region6: #{tpu_custom_call.1} parent=1 // pred_check
      _
    $region7: #{tpu_custom_call.1} parent=1 // pred_check_branch
      %18 = sbr.rel (0) target = $region9
    $region8: #{tpu_custom_call.1} parent=1 // pred_region
      %19 = dma.done [#allocation3], 128
    $region9: #{tpu_custom_call.1} parent=1 // pred_fallthru
      _
    %v20 = vld [vmem:[#allocation2] sm:$0xff]
    %v21 = vmul.f32 %v20, %v20
    %vm22 = vcmask 261120
    %v23 = vsel %vm22, %v21, 0.0
    %24 = vadd.xlane.f32.xlu0 %v23
    %v25 = vpop.xlane.xlu0 %24
    %v26 = vrsqrt.pop %v25
    %vm27 = vcmask 7168
    %28 = vst.msk [vmem:[%s1] sm:$0xff] %vm27, %v26
    // Predicated region
    $region10: #{tpu_custom_call.1} parent=1 // pred_check
      _
    $region11: #{tpu_custom_call.1} parent=1 // pred_check_branch
      %30 = sbr.rel (0) target = $region13
    $region12: #{tpu_custom_call.1} parent=1 // pred_region
      _
    $region13: #{tpu_custom_call.1} parent=1 // pred_fallthru
      _
    // Predicated region
    $region14: #{tpu_custom_call.1} parent=1 // pred_check
      _
    $region15: #{tpu_custom_call.1} parent=1 // pred_check_branch
      %32 = sbr.rel (0) target = $region17
    $region16: #{tpu_custom_call.1} parent=1 // pred_region
      _
    $region17: #{tpu_custom_call.1} parent=1 // pred_fallthru
      _
    %33 = vsyncpa [#allocation3], 1

</llo_original>
